<compile_context>
chip_gen: v7x
topology: tpu7x:2x2x1
jax: 0.10.0
libtpu: 0.0.40
codegen_flags: <defaults>
</compile_context>

<pallas_src>
import jax
import jax.numpy as jnp
from jax.experimental import pallas as pl
from jax.experimental.pallas import tpu as pltpu


def conv3x3_prelu_kernel(alpha_ref, x_ref, w_ref, b_ref, o_ref, xpad_ref):
    # alpha_ref : (1,)                    f32 SMEM (scalar prefetch), PReLU slope
    # x_ref     : (Tb, H, W*Cin)          bf16 channels-last input rows
    # w_ref     : (3, (W+1)*Cin, W*Cout)  bf16 banded weights, one band per kh
    # b_ref     : (1, W*Cout)             f32 bias tiled per output pixel
    # o_ref     : (Tb*H, W*Cout)          f32 lane-dense output block
    # xpad_ref  : (Tb, H+2, (W+1)*Cin)    bf16 VMEM scratch (halo-padded rows)
    Tb, H, WCin = x_ref.shape
    K = w_ref.shape[1]                      # (W+1)*Cin
    M = Tb * H

    # Fused zero padding: zero the scratch (every step — scratch persists per
    # core, and with megacore sharding program_id(0)==0 may never run on the
    # second core), then drop the real rows into its interior.  Rows 0 and H+1
    # are the top/bottom halo; lanes [W*Cin, (W+1)*Cin) are the right halo
    # pixel group (the left halo is encoded in the band offsets).
    xpad_ref[...] = jnp.zeros_like(xpad_ref)
    xpad_ref[:, 1:H + 1, 0:WCin] = x_ref[...]

    def tap(kh):
        # (Tb, H, K) row slice shifted by kh, flattened to the matmul LHS.
        return xpad_ref[:, kh:kh + H, :].reshape(M, K)

    dims = (((1,), (0,)), ((), ()))
    acc = jax.lax.dot_general(tap(0), w_ref[0], dims,
                              preferred_element_type=jnp.float32)
    acc = acc + jax.lax.dot_general(tap(1), w_ref[1], dims,
                                    preferred_element_type=jnp.float32)
    acc = acc + jax.lax.dot_general(tap(2), w_ref[2], dims,
                                    preferred_element_type=jnp.float32)

    acc = acc + b_ref[...]                  # (1, W*Cout) broadcasts over (M, W*Cout)
    alpha = alpha_ref[0]                    # shared PReLU slope (scalar path)
    o_ref[...] = jnp.where(acc >= 0, acc, alpha * acc).astype(o_ref.dtype)


def _pick_tb(B, H, target_m=512):
    """Slices per grid step: grow the matmul M (=Tb*H) toward target_m to fill
    MXU rows / amortize per-step overhead, keep the output block (8,128)-legal,
    and keep >=2 grid blocks when possible (v7x has two TensorCores)."""
    candidates = [
        tb for tb in range(1, B + 1)
        if B % tb == 0
        and tb * H <= target_m
        and ((tb * H) % 8 == 0 or tb == B)
    ]
    if not candidates:
        return B
    multi = [tb for tb in candidates if B // tb >= 2]
    return max(multi) if multi else max(candidates)


def branch_block_2d_forward(x, w, b, alpha):
    """x: (N, Cin, D, H, W) f32.  w: (Cout, Cin, 1, 3, 3).  b: (Cout,).  alpha: ()"""
    N, Cin, D, H, W = x.shape
    Cout = w.shape[0]
    B = N * D
    WCin, WCout, WCinP = W * Cin, W * Cout, (W + 1) * Cin

    Tb = _pick_tb(B, H)
    n_blocks = B // Tb

    # NCDHW -> (N*D, H, W*Cin) channels-last rows, bf16 for the MXU.
    xb = jnp.transpose(x.astype(jnp.bfloat16), (0, 2, 3, 4, 1)).reshape(B, H, WCin)

    # Banded (block-Toeplitz) weights: band[kh, p*Cin+ci, w*Cout+co] =
    # weight[co, ci, kh, kw] with p = w + kw - 1 (left pad handled by dropping
    # p = -1; right pad lands on the zero lane group p = W).
    wt = jnp.transpose(w[:, :, 0], (2, 3, 1, 0)).astype(jnp.float32)   # (kh, kw, Cin, Cout)
    S = jnp.stack([jnp.eye(W + 1, W, k=1 - j, dtype=jnp.float32) for j in range(3)],
                  axis=-1)                                             # (W+1, W, kw)
    band = jnp.einsum('pwj,kjio->kpiwo', S, wt)                        # (3, W+1, Cin, W, Cout)
    band = band.reshape(3, WCinP, WCout).astype(jnp.bfloat16)

    bk = jnp.tile(b.astype(jnp.float32), W).reshape(1, WCout)          # bias per output pixel
    ak = jnp.asarray(alpha, jnp.float32).reshape(1)                    # scalar -> SMEM

    out2d = pl.pallas_call(
        conv3x3_prelu_kernel,
        out_shape=jax.ShapeDtypeStruct((B * H, WCout), x.dtype),
        grid_spec=pltpu.PrefetchScalarGridSpec(
            num_scalar_prefetch=1,
            grid=(n_blocks,),
            in_specs=[
                pl.BlockSpec((Tb, H, WCin), lambda i, a: (i, 0, 0)),
                pl.BlockSpec((3, WCinP, WCout), lambda i, a: (0, 0, 0)),
                pl.BlockSpec((1, WCout), lambda i, a: (0, 0)),
            ],
            out_specs=pl.BlockSpec((Tb * H, WCout), lambda i, a: (i, 0)),
            scratch_shapes=[pltpu.VMEM((Tb, H + 2, WCinP), jnp.bfloat16)],
        ),
        compiler_params=pltpu.CompilerParams(
            dimension_semantics=("parallel",),
        ),
    )(ak, xb, band, bk)

    # (B*H, W*Cout) has identical bytes to (N, D, H, W, Cout) row-major;
    # convert back to PyTorch's NCDHW convention.
    return out2d.reshape(N, D, H, W, Cout).transpose(0, 4, 1, 2, 3)


def _reference(x, w, b, alpha):
    """Pure-JAX reference of Conv3d(k=(1,3,3), p=(0,1,1)) + PReLU (f32)."""
    N, Cin, D, H, W = x.shape
    Cout = w.shape[0]
    x2 = x.transpose(0, 2, 1, 3, 4).reshape(N * D, Cin, H, W)  # NCHW per slice
    y = jax.lax.conv_general_dilated(
        x2, w[:, :, 0], window_strides=(1, 1), padding=((1, 1), (1, 1)),
        dimension_numbers=("NCHW", "OIHW", "NCHW"))
    y = y + b[None, :, None, None]
    y = jnp.where(y >= 0, y, alpha * y)
    return y.reshape(N, D, Cout, H, W).transpose(0, 2, 1, 3, 4)


if __name__ == "__main__":
    # Module defaults: in_channel=32, out_channel=32, kernel=(1,3,3), pad=(0,1,1)
    N, Cin, Cout, D, H, W = 2, 32, 32, 2, 8, 8

    key = jax.random.PRNGKey(0)
    kx, kwkey, kb = jax.random.split(key, 3)

    x = jax.random.normal(kx, (N, Cin, D, H, W), jnp.float32)

    # Deterministic parameter init (Conv3d-style fan-in scaling), PReLU init 0.25
    fan_in = Cin * 1 * 3 * 3
    bound = 1.0 / (fan_in ** 0.5)
    w = jax.random.uniform(kwkey, (Cout, Cin, 1, 3, 3), jnp.float32, -bound, bound)
    b = jax.random.uniform(kb, (Cout,), jnp.float32, -bound, bound)
    alpha = jnp.float32(0.25)

    y = branch_block_2d_forward(x, w, b, alpha)
    jax.block_until_ready(y)

    y_ref = _reference(x, w, b, alpha)
    assert y.shape == (N, Cout, D, H, W)
    # bf16 matmul inputs with f32 accumulation -> loosened tolerance vs f32 ref.
    max_err = float(jnp.max(jnp.abs(y - y_ref)))
    assert jnp.allclose(y, y_ref, atol=2e-2, rtol=2e-2), (
        f"mismatch vs reference (max abs err {max_err})")

    print("KERNEL_OK")
</pallas_src>

<mosaic_0001>
module attributes {stable_mosaic.version = 11 : i64} {
  func.func @conv3x3_prelu_kernel(%arg0: i32, %arg1: memref<1xf32, #tpu.memory_space<smem>>, %arg2: memref<2x8x256xbf16, #tpu.memory_space<vmem>>, %arg3: memref<3x288x256xbf16, #tpu.memory_space<vmem>>, %arg4: memref<1x256xf32, #tpu.memory_space<vmem>>, %arg5: memref<16x256xf32, #tpu.memory_space<vmem>>, %arg6: memref<2x10x288xbf16, #tpu.memory_space<vmem>>) attributes {dimension_semantics = [#tpu.dimension_semantics<parallel>], iteration_bounds = array<i64: 2>, scalar_prefetch = 1 : i64, scratch_operands = 1 : i64, tpu.core_type = #tpu.core_type<tc>, window_params = [{transform_indices = @transform_0, window_bounds = array<i64: 2, 8, 256>}, {pipeline_mode = #tpu.pipeline_mode<synchronous>, transform_indices = @transform_1, window_bounds = array<i64: 3, 288, 256>}, {pipeline_mode = #tpu.pipeline_mode<synchronous>, transform_indices = @transform_2, window_bounds = array<i64: 1, 256>}, {transform_indices = @transform_3, window_bounds = array<i64: 16, 256>}]} {
    %cst = arith.constant 0.000000e+00 : bf16
    %0 = vector.broadcast %cst : bf16 to vector<2x10x288xbf16>
    %c0 = arith.constant 0 : index
    %c0_0 = arith.constant 0 : index
    %c0_1 = arith.constant 0 : index
    %1 = vector.load %arg6[%c0, %c0_0, %c0_1] : memref<2x10x288xbf16, #tpu.memory_space<vmem>>, vector<2x10x288xbf16>
    tpu.vector_store %arg6[%c0, %c0_0, %c0_1], %0 {strides = array<i32>} : memref<2x10x288xbf16, #tpu.memory_space<vmem>>, vector<2x10x288xbf16>,
    %c0_2 = arith.constant 0 : index
    %c0_3 = arith.constant 0 : index
    %c0_4 = arith.constant 0 : index
    %2 = vector.load %arg2[%c0_2, %c0_3, %c0_4] : memref<2x8x256xbf16, #tpu.memory_space<vmem>>, vector<2x8x256xbf16>
    %c0_5 = arith.constant 0 : index
    %c1 = arith.constant 1 : index
    %c0_6 = arith.constant 0 : index
    %3 = vector.load %arg6[%c0_5, %c1, %c0_6] : memref<2x10x288xbf16, #tpu.memory_space<vmem>>, vector<2x8x256xbf16>
    tpu.vector_store %arg6[%c0_5, %c1, %c0_6], %2 {strides = array<i32>} : memref<2x10x288xbf16, #tpu.memory_space<vmem>>, vector<2x8x256xbf16>,
    %c0_7 = arith.constant 0 : index
    %c0_8 = arith.constant 0 : index
    %c0_9 = arith.constant 0 : index
    %4 = vector.load %arg6[%c0_7, %c0_8, %c0_9] : memref<2x10x288xbf16, #tpu.memory_space<vmem>>, vector<2x8x288xbf16>
    %5 = vector.shape_cast %4 : vector<2x8x288xbf16> to vector<16x288xbf16>
    %c0_10 = arith.constant 0 : index
    %c0_11 = arith.constant 0 : index
    %c0_12 = arith.constant 0 : index
    %6 = vector.load %arg3[%c0_10, %c0_11, %c0_12] : memref<3x288x256xbf16, #tpu.memory_space<vmem>>, vector<1x288x256xbf16>
    %7 = vector.shape_cast %6 : vector<1x288x256xbf16> to vector<288x256xbf16>
    %cst_13 = arith.constant dense<0.000000e+00> : vector<16x256xf32>
    %8 = tpu.matmul %5, %7, %cst_13 {dimension_numbers = #tpu.dot_dimension_numbers<[1], [0], [0], [1], [0, 0, 1, 1], [], []>} : vector<16x288xbf16>, vector<288x256xbf16>, vector<16x256xf32> -> vector<16x256xf32>
    %c0_14 = arith.constant 0 : index
    %c1_15 = arith.constant 1 : index
    %c0_16 = arith.constant 0 : index
    %9 = vector.load %arg6[%c0_14, %c1_15, %c0_16] : memref<2x10x288xbf16, #tpu.memory_space<vmem>>, vector<2x8x288xbf16>
    %10 = vector.shape_cast %9 : vector<2x8x288xbf16> to vector<16x288xbf16>
    %c1_17 = arith.constant 1 : index
    %c0_18 = arith.constant 0 : index
    %c0_19 = arith.constant 0 : index
    %11 = vector.load %arg3[%c1_17, %c0_18, %c0_19] : memref<3x288x256xbf16, #tpu.memory_space<vmem>>, vector<1x288x256xbf16>
    %12 = vector.shape_cast %11 : vector<1x288x256xbf16> to vector<288x256xbf16>
    %cst_20 = arith.constant dense<0.000000e+00> : vector<16x256xf32>
    %13 = tpu.matmul %10, %12, %cst_20 {dimension_numbers = #tpu.dot_dimension_numbers<[1], [0], [0], [1], [0, 0, 1, 1], [], []>} : vector<16x288xbf16>, vector<288x256xbf16>, vector<16x256xf32> -> vector<16x256xf32>
    %14 = arith.addf %8, %13 : vector<16x256xf32>
    %c0_21 = arith.constant 0 : index
    %c2 = arith.constant 2 : index
    %c0_22 = arith.constant 0 : index
    %15 = vector.load %arg6[%c0_21, %c2, %c0_22] : memref<2x10x288xbf16, #tpu.memory_space<vmem>>, vector<2x8x288xbf16>
    %16 = vector.shape_cast %15 : vector<2x8x288xbf16> to vector<16x288xbf16>
    %c2_23 = arith.constant 2 : index
    %c0_24 = arith.constant 0 : index
    %c0_25 = arith.constant 0 : index
    %17 = vector.load %arg3[%c2_23, %c0_24, %c0_25] : memref<3x288x256xbf16, #tpu.memory_space<vmem>>, vector<1x288x256xbf16>
    %18 = vector.shape_cast %17 : vector<1x288x256xbf16> to vector<288x256xbf16>
    %cst_26 = arith.constant dense<0.000000e+00> : vector<16x256xf32>
    %19 = tpu.matmul %16, %18, %cst_26 {dimension_numbers = #tpu.dot_dimension_numbers<[1], [0], [0], [1], [0, 0, 1, 1], [], []>} : vector<16x288xbf16>, vector<288x256xbf16>, vector<16x256xf32> -> vector<16x256xf32>
    %20 = arith.addf %14, %19 : vector<16x256xf32>
    %c0_27 = arith.constant 0 : index
    %c0_28 = arith.constant 0 : index
    %21 = vector.load %arg4[%c0_27, %c0_28] : memref<1x256xf32, #tpu.memory_space<vmem>>, vector<1x256xf32>
    %22 = vector.broadcast %21 : vector<1x256xf32> to vector<16x256xf32>
    %23 = arith.addf %20, %22 : vector<16x256xf32>
    %c0_29 = arith.constant 0 : index
    %24 = memref.load %arg1[%c0_29] : memref<1xf32, #tpu.memory_space<smem>>
    %cst_30 = arith.constant 0.000000e+00 : f32
    %25 = vector.broadcast %cst_30 : f32 to vector<16x256xf32>
    %26 = arith.cmpf oge, %23, %25 : vector<16x256xf32>
    %27 = vector.broadcast %24 : f32 to vector<16x256xf32>
    %28 = arith.mulf %27, %23 : vector<16x256xf32>
    %29 = arith.select %26, %23, %28 : vector<16x256xi1>, vector<16x256xf32>
    %c0_31 = arith.constant 0 : index
    %c0_32 = arith.constant 0 : index
    %30 = vector.load %arg5[%c0_31, %c0_32] : memref<16x256xf32, #tpu.memory_space<vmem>>, vector<16x256xf32>
    tpu.vector_store %arg5[%c0_31, %c0_32], %29 {strides = array<i32>} : memref<16x256xf32, #tpu.memory_space<vmem>>, vector<16x256xf32>,
    return
  }
  func.func @transform_0(%arg0: i32, %arg1: memref<1xf32, #tpu.memory_space<smem>>) -> (i32, i32, i32) {
    %c0_i32 = arith.constant 0 : i32
    %c0_i32_0 = arith.constant 0 : i32
    %c0_i32_1 = arith.constant 0 : i32
    return %arg0, %c0_i32, %c0_i32_0 : i32, i32, i32
  }
  func.func @transform_1(%arg0: i32, %arg1: memref<1xf32, #tpu.memory_space<smem>>) -> (i32, i32, i32) {
    %c0_i32 = arith.constant 0 : i32
    %c0_i32_0 = arith.constant 0 : i32
    %c0_i32_1 = arith.constant 0 : i32
    %c0_i32_2 = arith.constant 0 : i32
    return %c0_i32, %c0_i32_0, %c0_i32_1 : i32, i32, i32
  }
  func.func @transform_2(%arg0: i32, %arg1: memref<1xf32, #tpu.memory_space<smem>>) -> (i32, i32) {
    %c0_i32 = arith.constant 0 : i32
    %c0_i32_0 = arith.constant 0 : i32
    %c0_i32_1 = arith.constant 0 : i32
    return %c0_i32, %c0_i32_0 : i32, i32
  }
  func.func @transform_3(%arg0: i32, %arg1: memref<1xf32, #tpu.memory_space<smem>>) -> (i32, i32) {
    %c0_i32 = arith.constant 0 : i32
    %c0_i32_0 = arith.constant 0 : i32
    return %arg0, %c0_i32 : i32, i32
  }
}

</mosaic_0001>

<llo_original>
// kernel: tpu_custom_call.1
$region0: #{tpu_custom_call.1}
  #allocation0 [shape = 'u32[]', space=smem, size = 0x4, offset = 0x4, fixed_abs, tag = 'smem constant byte address 0x4 - core index']
  #allocation1 [shape = 'u32[144,128]{1,0:T(1,128)}', space=vmem, size = 0x12000, scoped, tag = 'internal scratch']
  #allocation2 [shape = 'bf16[2,10,288]{2,1,0:T(8,128)(2,1)}', space=vmem, size = 0x6000, scoped, tag = 'scratch operand']
  #allocation3 [shape = 's32[1]{0}', space=sflag, size = 0x4, scoped, tag = 'scoped memory for tpu_custom_call.1']
  #allocation4 [shape = 'f32[1]{0:T(128)S(6)}', space=smem, size = 0x200, scoped, tag = 'prefetched SMEM operand 0']
  %s0 = inlined_call_operand.<no memory space> [shape: f32[1], index: 0, kind: input, shape index: {}]
  %s1 = inlined_call_operand.hbm [shape: bf16[4,8,256], index: 1, kind: input, shape index: {}]
  %s2 = inlined_call_operand.hbm [shape: bf16[3,288,256], index: 2, kind: input, shape index: {}]
  %s3 = inlined_call_operand.vmem [shape: f32[1,256], index: 3, kind: input, shape index: {}]
  %s4 = inlined_call_operand.hbm [shape: f32[32,256], index: 4, kind: output, shape index: {}]
  %s5 = sld [smem:[#allocation0]]
  $region53: #{tpu_custom_call.1} parent=0
    _
  %s7 = ssub.s32 1, %s5
  %s8 = scalar_select 0, %s7, %s5
  %9 = sst [smem:[#allocation4]] %s0
  $region1: #{tpu_custom_call.1} parent=0
    #allocation5 [shape = 'u8[16384]{0}', space=vmem, size = 0x4000, scoped, tag = 'input window, operand 1']
    #allocation6 [shape = 's32[2]{0}', space=sflag, size = 0x8, scoped, tag = 'scoped memory for tpu_custom_call.1']
    #allocation7 [shape = 's32[2]{0}', space=sflag, size = 0x8, scoped, tag = 'scoped memory for tpu_custom_call.1']
    #allocation8 [shape = 'u8[442368]{0}', space=vmem, size = 0x6c000, scoped, tag = 'input window, operand 2, single buffered']
    #allocation9 [shape = 's32[1]{0}', space=sflag, size = 0x4, scoped, tag = 'scoped memory for tpu_custom_call.1']
    #allocation10 [shape = 'u8[32768]{0}', space=vmem, size = 0x8000, scoped, tag = 'output window, operand 0']
    %10 = vsyncpa [#allocation6], 0
    %s11 = scalar_lea.sflag [#allocation6], 1
    %12 = vsyncpa %s11, 0
    %13 = vsyncpa [#allocation9], 0
    %14 = vsyncpa [#allocation7], 0
    %s15 = scalar_lea.sflag [#allocation7], 1
    %16 = vsyncpa %s15, 0
    loop: start=0, step=1, limit=4
    $region2: #{tpu_custom_call.1} parent=1 // loop_pre_header
      _
    $region3: #{tpu_custom_call.1} parent=1 // loop_header
      %s18 = sphi 0, %s22
      %p19 = scmp.ge.s32.totalorder %s18, 4
      %s28 = sphi 0, %s30
      %s31 = sphi 0, %s28
      %s32 = sphi 0, %s31
      %s48 = sphi 0, %s32
      %s52 = sphi 0, %s52
      %s54 = sphi 0, %s52
      %s55 = sphi 0, %s54
      %s69 = sphi 0, %s55
      %s73 = sphi 0, %s73
      %s75 = sphi 0, %s73
      %s76 = sphi 0, %s75
      %s90 = sphi 0, %s76
      %s96 = sphi 0, %s98
      %s99 = sphi 0, %s96
      %s100 = sphi 0, %s99
      %s116 = sphi 0, %s100
    $region4: #{tpu_custom_call.1} parent=1 // loop_header_branch
      %21 = sbr.rel (%p19) target = $region8
    $region5: #{tpu_custom_call.1} parent=1 // loop_body
      %s23 = ssub.s32 %s18, 1
      %s24 = ssub.s32 %s18, 2
      %s25 = sadd.s32 %s18, 1
      %s26 = ssub.s32 %s18, %s25
      %p27 = scmp.eq.s32.totalorder %s26, 0
      %s29 = sadd.s32 %s28, 1
      %s30 = scalar_select %p27, %s28, %s29
      %p33 = pneg %p27
      %p34 = scmp.eq.s32.totalorder %s18, 1
      %p35 = por %p33, %p34
      %p36 = scmp.ne.s32.totalorder %s28, %s31
      %p37 = scmp.eq.s32.totalorder %s18, 0
      %p38 = por %p36, %p37
      %p39 = scmp.ne.s32.totalorder %s28, %s31
      %p40 = scmp.eq.s32.totalorder %s23, 1
      %p41 = por %p39, %p40
      %p42 = scmp.ne.s32.totalorder %s31, %s32
      %p43 = scmp.eq.s32.totalorder %s23, 0
      %p44 = por %p42, %p43
      %p45 = scmp.ne.s32.totalorder %s31, %s32
      %p46 = scmp.eq.s32.totalorder %s24, 1
      %p47 = por %p45, %p46
      %p49 = scmp.ne.s32.totalorder %s32, %s48
      %p50 = scmp.eq.s32.totalorder %s24, 0
      %p51 = por %p49, %p50
      %s53 = sadd.s32 %s52, 1
      %p56 = scmp.eq.s32.totalorder %s18, 1
      %p57 = scmp.ne.s32.totalorder %s52, %s54
      %p58 = scmp.eq.s32.totalorder %s18, 0
      %p59 = por %p57, %p58
      %p60 = scmp.ne.s32.totalorder %s52, %s54
      %p61 = scmp.eq.s32.totalorder %s23, 1
      %p62 = por %p60, %p61
      %p63 = scmp.ne.s32.totalorder %s54, %s55
      %p64 = scmp.eq.s32.totalorder %s23, 0
      %p65 = por %p63, %p64
      %p66 = scmp.ne.s32.totalorder %s54, %s55
      %p67 = scmp.eq.s32.totalorder %s24, 1
      %p68 = por %p66, %p67
      %p70 = scmp.ne.s32.totalorder %s55, %s69
      %p71 = scmp.eq.s32.totalorder %s24, 0
      %p72 = por %p70, %p71
      %s74 = sadd.s32 %s73, 1
      %p77 = scmp.eq.s32.totalorder %s18, 1
      %p78 = scmp.ne.s32.totalorder %s73, %s75
      %p79 = scmp.eq.s32.totalorder %s18, 0
      %p80 = por %p78, %p79
      %p81 = scmp.ne.s32.totalorder %s73, %s75
      %p82 = scmp.eq.s32.totalorder %s23, 1
      %p83 = por %p81, %p82
      %p84 = scmp.ne.s32.totalorder %s75, %s76
      %p85 = scmp.eq.s32.totalorder %s23, 0
      %p86 = por %p84, %p85
      %p87 = scmp.ne.s32.totalorder %s75, %s76
      %p88 = scmp.eq.s32.totalorder %s24, 1
      %p89 = por %p87, %p88
      %p91 = scmp.ne.s32.totalorder %s76, %s90
      %p92 = scmp.eq.s32.totalorder %s24, 0
      %p93 = por %p91, %p92
      %s94 = ssub.s32 %s18, %s25
      %p95 = scmp.eq.s32.totalorder %s94, 0
      %s97 = sadd.s32 %s96, 1
      %s98 = scalar_select %p95, %s96, %s97
      %p101 = pneg %p95
      %p102 = scmp.eq.s32.totalorder %s18, 1
      %p103 = por %p101, %p102
      %p104 = scmp.ne.s32.totalorder %s96, %s99
      %p105 = scmp.eq.s32.totalorder %s18, 0
      %p106 = por %p104, %p105
      %p107 = scmp.ne.s32.totalorder %s96, %s99
      %p108 = scmp.eq.s32.totalorder %s23, 1
      %p109 = por %p107, %p108
      %p110 = scmp.ne.s32.totalorder %s99, %s100
      %p111 = scmp.eq.s32.totalorder %s23, 0
      %p112 = por %p110, %p111
      %p113 = scmp.ne.s32.totalorder %s99, %s100
      %p114 = scmp.eq.s32.totalorder %s24, 1
      %p115 = por %p113, %p114
      %p117 = scmp.ne.s32.totalorder %s100, %s116
      %p118 = scmp.eq.s32.totalorder %s24, 0
      %p119 = por %p117, %p118
      %p120 = scmp.le.s32.totalorder 1, %s18
      %p121 = scmp.lt.s32.totalorder %s18, 3
      %p122 = pnand %p120, %p121
      %p123 = pneg %p122
      // Predicated region
      $region9: #{tpu_custom_call.1} parent=5 // pred_check
        _
      $region10: #{tpu_custom_call.1} parent=5 // pred_check_branch
        %125 = sbr.rel (%p122) target = $region12
      $region11: #{tpu_custom_call.1} parent=5 // pred_region
        %s126 = ssub.s32 %s18, 1
        // Predicated region
        $region13: #{tpu_custom_call.1} parent=11 // pred_check
          %p127 = pneg %p65
        $region14: #{tpu_custom_call.1} parent=11 // pred_check_branch
          %129 = sbr.rel (%p127) target = $region16
        $region15: #{tpu_custom_call.1} parent=11 // pred_region
          %s131 = ssub.s32 13824, 13824
          %132 = vsyncadd [#allocation9], %s131
          %s133 = sshll.u32 [#allocation8], 4
          %s134 = int_to_ptr.vmem [resolvable:$true] %s133
          %139 = dma.hbm_to_vmem [thread:$0]  %s2, 13824, %s134, [#allocation9], 128, 128, 8
        $region16: #{tpu_custom_call.1} parent=11 // pred_fallthru
          _
        // Predicated region
        $region17: #{tpu_custom_call.1} parent=11 // pred_check
          %p140 = pneg %p86
        $region18: #{tpu_custom_call.1} parent=11 // pred_check_branch
          %142 = sbr.rel (%p140) target = $region20
        $region19: #{tpu_custom_call.1} parent=11 // pred_region
          _
        $region20: #{tpu_custom_call.1} parent=11 // pred_fallthru
          _
      $region12: #{tpu_custom_call.1} parent=5 // pred_fallthru
        _
      %p143 = scmp.lt.s32.totalorder %s18, 2
      // Predicated region
      $region21: #{tpu_custom_call.1} parent=5 // pred_check
        %p144 = pneg %p143
      $region22: #{tpu_custom_call.1} parent=5 // pred_check_branch
        %146 = sbr.rel (%p144) target = $region24
      $region23: #{tpu_custom_call.1} parent=5 // pred_region
        // Predicated region
        $region25: #{tpu_custom_call.1} parent=23 // pred_check
          %p147 = pneg %p38
        $region26: #{tpu_custom_call.1} parent=23 // pred_check_branch
          %149 = sbr.rel (%p147) target = $region28
        $region27: #{tpu_custom_call.1} parent=23 // pred_region
          %s150 = sand.u32 %s28, 1
          %s151 = scalar_lea.sflag [#allocation6], %s150
          %s152 = sand.u32 %s28, 1
          %s153 = smul.addr %s152, 16
          %s154 = scalar_lea.vmem [#allocation5], %s153
          %s155 = smul.u32 2, %s18
          %s157 = ssub.s32 256, 256
          %158 = vsyncadd %s151, %s157
          %s159 = smul.addr %s155, 2
          %s160 = smul.addr %s159, 64
          %s161 = scalar_lea.hbm %s1, %s160
          %s162 = sshll.u32 %s154, 4
          %s163 = int_to_ptr.vmem [resolvable:$true] %s162
          %168 = dma.hbm_to_vmem [thread:$0]  %s161, 256, %s163, %s151, 128, 128, 8
        $region28: #{tpu_custom_call.1} parent=23 // pred_fallthru
          _
      $region24: #{tpu_custom_call.1} parent=5 // pred_fallthru
        _
      %p169 = scmp.le.s32.totalorder 1, %s18
      %p170 = scmp.lt.s32.totalorder %s18, 3
      %p171 = pnand %p169, %p170
      %p172 = pneg %p171
      // Predicated region
      $region29: #{tpu_custom_call.1} parent=5 // pred_check
        _
      $region30: #{tpu_custom_call.1} parent=5 // pred_check_branch
        %174 = sbr.rel (%p171) target = $region32
      $region31: #{tpu_custom_call.1} parent=5 // pred_region
        %s175 = ssub.s32 %s18, 1
        %s176 = sand.u32 %s31, 1
        %s177 = scalar_lea.sflag [#allocation6], %s176
        %s178 = sand.u32 %s31, 1
        %s179 = smul.addr %s178, 16
        %s180 = scalar_lea.vmem [#allocation5], %s179
        // Predicated region
        $region33: #{tpu_custom_call.1} parent=31 // pred_check
          %p181 = pneg %p44
        $region34: #{tpu_custom_call.1} parent=31 // pred_check_branch
          %183 = sbr.rel (%p181) target = $region36
        $region35: #{tpu_custom_call.1} parent=31 // pred_region
          %184 = dma.done %s177, 256
        $region36: #{tpu_custom_call.1} parent=31 // pred_fallthru
          _
        // Predicated region
        $region37: #{tpu_custom_call.1} parent=31 // pred_check
          %p185 = pneg %p65
        $region38: #{tpu_custom_call.1} parent=31 // pred_check_branch
          %187 = sbr.rel (%p185) target = $region40
        $region39: #{tpu_custom_call.1} parent=31 // pred_region
          %188 = dma.done [#allocation9], 13824
        $region40: #{tpu_custom_call.1} parent=31 // pred_fallthru
          _
        %s189 = sand.u32 %s31, 1
        %s190 = scalar_lea.sflag [#allocation6], %s189
        %s191 = sand.u32 %s31, 1
        %s192 = smul.addr %s191, 16
        %s193 = scalar_lea.vmem [#allocation5], %s192
        %p194 = pneg %p44
        %p195 = pneg %p41
        %p196 = pneg %p65
        %p197 = pneg %p62
        %p198 = pneg %p86
        %p199 = pneg %p83
        %p200 = pneg %p112
        %p201 = pneg %p109
        %s202 = sand.u32 %s99, 1
        %s203 = scalar_lea.sflag [#allocation7], %s202
        %s204 = sand.u32 %s99, 1
        %s205 = smul.addr %s204, 32
        %s206 = scalar_lea.vmem [#allocation10], %s205
        %s207 = smul.u32 2, %s23
        %s208 = smul.u32 2, %s23
        %210 = vst [vmem:[#allocation2] sm:$0xff] 0
        %vm211 = vcmask 257024
        %212 = vst.msk [vmem:[#allocation2 + $0x8] sm:$0xf] %vm211, 0
        %213 = vst [vmem:[#allocation2 + $0xc] sm:$0x11] 0
        %vm214 = vcmask 253952
        %215 = vst.msk [vmem:[#allocation2 + $0x14] sm:$0x1] %vm214, 0
        %216 = vst [vmem:[#allocation2 + $0x18] sm:$0xff] 0
        %217 = vst.msk [vmem:[#allocation2 + $0x20] sm:$0xf] %vm211, 0
        %218 = vst [vmem:[#allocation2 + $0x24] sm:$0x11] 0
        %219 = vst.msk [vmem:[#allocation2 + $0x2c] sm:$0x1] %vm214, 0
        %v220 = vld [vmem:[%s180] sm:$0xff]
        %v221 = vld [vmem:[%s180 + $0x8] sm:$0xff]
        %v223 = vshrl.u32 %v220, 16
        %v225 = vrot.slane %v223, 7
        %v226 = vshll.u32 %v220, 16
        %v228 = vor.u32 %v225, %v226
        %v229 = vrot.slane %v225, 4
        %v231 = vshrl.u32 %v221, 16
        %v233 = vrot.slane %v231, 7
        %v234 = vshll.u32 %v221, 16
        %v236 = vor.u32 %v233, %v234
        %v237 = vrot.slane %v233, 4
        %vm242 = vcmask 1043456
        %vm243 = vsmask.f32 7938
        %vm244 = vmand %vm242, %vm243
        %vm245 = vcmask 1047556
        %vm246 = vsmask.f32 7954
        %vm247 = vmand %vm245, %vm246
        %vm248 = vmor %vm247, %vm244
        %v249 = vld [vmem:[#allocation2] sm:$0xff]
        %v250 = vsel %vm248, %v228, %v249
        %251 = vst [vmem:[#allocation2] sm:$0xff] %v250
        %vm252 = vcmask 1040384
        %vm253 = vsmask.f32 256
        %vm254 = vmand %vm252, %vm253
        %vm255 = vcmask 1044484
        %vm256 = vsmask.f32 4352
        %vm257 = vmand %vm255, %vm256
        %vm258 = vmor %vm257, %vm254
        %v259 = vld [vmem:[#allocation2 + $0xc] sm:$0x11]
        %v260 = vsel %vm258, %v229, %v259
        %261 = vst [vmem:[#allocation2 + $0xc] sm:$0x11] %v260
        %v262 = vld [vmem:[#allocation2 + $0x18] sm:$0xff]
        %v263 = vsel %vm248, %v236, %v262
        %264 = vst [vmem:[#allocation2 + $0x18] sm:$0xff] %v263
        %v265 = vld [vmem:[#allocation2 + $0x24] sm:$0x11]
        %v266 = vsel %vm258, %v237, %v265
        %267 = vst [vmem:[#allocation2 + $0x24] sm:$0x11] %v266
        %v268 = vld [vmem:[#allocation2] sm:$0xff]
        %v269 = vld [vmem:[#allocation2 + $0x8] sm:$0xf]
        %v270 = vld [vmem:[#allocation2 + $0x18] sm:$0xff]
        %v271 = vld [vmem:[#allocation2 + $0x20] sm:$0xf]
        %v272 = vld [vmem:[#allocation8] sm:$0xff]
        %v273 = vld [vmem:[#allocation8 + $0x8] sm:$0xff]
        %v274 = vld [vmem:[#allocation8 + $0x10] sm:$0xff]
        %v275 = vld [vmem:[#allocation8 + $0x18] sm:$0xff]
        %v276 = vld [vmem:[#allocation8 + $0x20] sm:$0xff]
        %v277 = vld [vmem:[#allocation8 + $0x28] sm:$0xff]
        %v278 = vld [vmem:[#allocation8 + $0x30] sm:$0xff]
        %v279 = vld [vmem:[#allocation8 + $0x38] sm:$0xff]
        %v280 = vld [vmem:[#allocation8 + $0x40] sm:$0xff]
        %v281 = vld [vmem:[#allocation8 + $0x48] sm:$0xff]
        %v282 = vld [vmem:[#allocation8 + $0x50] sm:$0xff]
        %v283 = vld [vmem:[#allocation8 + $0x58] sm:$0xff]
        %v284 = vld [vmem:[#allocation8 + $0x60] sm:$0xff]
        %v285 = vld [vmem:[#allocation8 + $0x68] sm:$0xff]
        %v286 = vld [vmem:[#allocation8 + $0x70] sm:$0xff]
        %v287 = vld [vmem:[#allocation8 + $0x78] sm:$0xff]
        %v288 = vld [vmem:[#allocation8 + $0x80] sm:$0xff]
        %v289 = vld [vmem:[#allocation8 + $0x88] sm:$0xff]
        %v290 = vld [vmem:[#allocation8 + $0x90] sm:$0xff]
        %v291 = vld [vmem:[#allocation8 + $0x98] sm:$0xff]
        %v292 = vld [vmem:[#allocation8 + $0xa0] sm:$0xff]
        %v293 = vld [vmem:[#allocation8 + $0xa8] sm:$0xff]
        %v294 = vld [vmem:[#allocation8 + $0xb0] sm:$0xff]
        %v295 = vld [vmem:[#allocation8 + $0xb8] sm:$0xff]
        %v296 = vld [vmem:[#allocation8 + $0xc0] sm:$0xff]
        %v297 = vld [vmem:[#allocation8 + $0xc8] sm:$0xff]
        %v298 = vld [vmem:[#allocation8 + $0xd0] sm:$0xff]
        %v299 = vld [vmem:[#allocation8 + $0xd8] sm:$0xff]
        %v300 = vld [vmem:[#allocation8 + $0xe0] sm:$0xff]
        %v301 = vld [vmem:[#allocation8 + $0xe8] sm:$0xff]
        %v302 = vld [vmem:[#allocation8 + $0xf0] sm:$0xff]
        %v303 = vld [vmem:[#allocation8 + $0xf8] sm:$0xff]
        %v304 = vld [vmem:[#allocation8 + $0x100] sm:$0xff]
        %v305 = vld [vmem:[#allocation8 + $0x108] sm:$0xff]
        %v306 = vld [vmem:[#allocation8 + $0x110] sm:$0xff]
        %v307 = vld [vmem:[#allocation8 + $0x118] sm:$0xff]
        %v308 = vld [vmem:[#allocation2 + $0xc] sm:$0x11]
        %v309 = vld [vmem:[#allocation2 + $0x14] sm:$0x1]
        %v310 = vld [vmem:[#allocation2 + $0x24] sm:$0x11]
        %v311 = vld [vmem:[#allocation2 + $0x2c] sm:$0x1]
        %vm312 = vsmask.f32 3328
        %vm313 = vsmask.f32 7440
        %vm314 = vmor %vm312, %vm313
        %v316 = vshrl.u32 %v268, 16
        %v318 = vrot.slane %v316, 4
        %v319 = vshll.u32 %v268, 16
        %v321 = vrot.slane %v319, 5
        %v322 = vor.u32 %v318, %v321
        %v323 = vrot.slane %v322, 4
        %v325 = vshll.u32 %v308, 16
        %v327 = vrot.slane %v325, 5
        %v328 = vsel %vm314, %v323, %v327
        %v330 = vshrl.u32 %v269, 16
        %v332 = vrot.slane %v330, 4
        %v333 = vshll.u32 %v269, 16
        %v335 = vrot.slane %v333, 5
        %v336 = vor.u32 %v332, %v335
        %v337 = vrot.slane %v336, 4
        %v339 = vshll.u32 %v309, 16
        %v341 = vrot.slane %v339, 5
        %v342 = vsel %vm314, %v337, %v341
        %v344 = vshrl.u32 %v270, 16
        %v346 = vrot.slane %v344, 4
        %v347 = vshll.u32 %v270, 16
        %v349 = vrot.slane %v347, 5
        %v350 = vor.u32 %v346, %v349
        %v351 = vrot.slane %v350, 4
        %v353 = vshll.u32 %v310, 16
        %v355 = vrot.slane %v353, 5
        %v356 = vsel %vm314, %v351, %v355
        %v358 = vshrl.u32 %v271, 16
        %v360 = vrot.slane %v358, 4
        %v361 = vshll.u32 %v271, 16
        %v363 = vrot.slane %v361, 5
        %v364 = vor.u32 %v360, %v363
        %v365 = vrot.slane %v364, 4
        %v367 = vshll.u32 %v311, 16
        %v369 = vrot.slane %v367, 5
        %v370 = vsel %vm314, %v365, %v369
        %s371 = scalar_lea.vmem [#allocation8], 288
        %v372 = vld [vmem:[%s371] sm:$0xff]
        %v373 = vld [vmem:[%s371 + $0x8] sm:$0xff]
        %v374 = vld [vmem:[%s371 + $0x10] sm:$0xff]
        %v375 = vld [vmem:[%s371 + $0x18] sm:$0xff]
        %v376 = vld [vmem:[%s371 + $0x20] sm:$0xff]
        %v377 = vld [vmem:[%s371 + $0x28] sm:$0xff]
        %v378 = vld [vmem:[%s371 + $0x30] sm:$0xff]
        %v379 = vld [vmem:[%s371 + $0x38] sm:$0xff]
        %v380 = vld [vmem:[%s371 + $0x40] sm:$0xff]
        %v381 = vld [vmem:[%s371 + $0x48] sm:$0xff]
        %v382 = vld [vmem:[%s371 + $0x50] sm:$0xff]
        %v383 = vld [vmem:[%s371 + $0x58] sm:$0xff]
        %v384 = vld [vmem:[%s371 + $0x60] sm:$0xff]
        %v385 = vld [vmem:[%s371 + $0x68] sm:$0xff]
        %v386 = vld [vmem:[%s371 + $0x70] sm:$0xff]
        %v387 = vld [vmem:[%s371 + $0x78] sm:$0xff]
        %v388 = vld [vmem:[%s371 + $0x80] sm:$0xff]
        %v389 = vld [vmem:[%s371 + $0x88] sm:$0xff]
        %v390 = vld [vmem:[%s371 + $0x90] sm:$0xff]
        %v391 = vld [vmem:[%s371 + $0x98] sm:$0xff]
        %v392 = vld [vmem:[%s371 + $0xa0] sm:$0xff]
        %v393 = vld [vmem:[%s371 + $0xa8] sm:$0xff]
        %v394 = vld [vmem:[%s371 + $0xb0] sm:$0xff]
        %v395 = vld [vmem:[%s371 + $0xb8] sm:$0xff]
        %v396 = vld [vmem:[%s371 + $0xc0] sm:$0xff]
        %v397 = vld [vmem:[%s371 + $0xc8] sm:$0xff]
        %v398 = vld [vmem:[%s371 + $0xd0] sm:$0xff]
        %v399 = vld [vmem:[%s371 + $0xd8] sm:$0xff]
        %v400 = vld [vmem:[%s371 + $0xe0] sm:$0xff]
        %v401 = vld [vmem:[%s371 + $0xe8] sm:$0xff]
        %v402 = vld [vmem:[%s371 + $0xf0] sm:$0xff]
        %v403 = vld [vmem:[%s371 + $0xf8] sm:$0xff]
        %v404 = vld [vmem:[%s371 + $0x100] sm:$0xff]
        %v405 = vld [vmem:[%s371 + $0x108] sm:$0xff]
        %v406 = vld [vmem:[%s371 + $0x110] sm:$0xff]
        %v407 = vld [vmem:[%s371 + $0x118] sm:$0xff]
        %v408 = vunpack.c.l.b16 %v328
        %v409 = vunpack.c.h.b16 %v328
        %v410 = vunpack.c.l.b16 %v342
        %v411 = vunpack.c.l.b16 %v356
        %v412 = vunpack.c.h.b16 %v356
        %v413 = vunpack.c.l.b16 %v370
        %v414 = vpack.c.b16 %v411, %v408
        %v415 = vpack.c.b16 %v412, %v409
        %v416 = vpack.c.b16 %v413, %v410
        %v455 = vunpack.c.l.b16 %v372
        %v456 = vunpack.c.h.b16 %v372
        %v457 = vunpack.c.l.b16 %v373
        %v458 = vunpack.c.h.b16 %v373
        %v459 = vunpack.c.l.b16 %v374
        %v460 = vunpack.c.h.b16 %v374
        %v461 = vunpack.c.l.b16 %v375
        %v462 = vunpack.c.h.b16 %v375
        %v463 = vunpack.c.l.b16 %v376
        %v464 = vunpack.c.h.b16 %v376
        %v465 = vunpack.c.l.b16 %v377
        %v466 = vunpack.c.h.b16 %v377
        %v467 = vunpack.c.l.b16 %v378
        %v468 = vunpack.c.h.b16 %v378
        %v469 = vunpack.c.l.b16 %v379
        %v470 = vunpack.c.h.b16 %v379
        %v471 = vunpack.c.l.b16 %v380
        %v472 = vunpack.c.h.b16 %v380
        %v473 = vunpack.c.l.b16 %v381
        %v474 = vunpack.c.h.b16 %v381
        %v475 = vunpack.c.l.b16 %v382
        %v476 = vunpack.c.h.b16 %v382
        %v477 = vunpack.c.l.b16 %v383
        %v478 = vunpack.c.h.b16 %v383
        %v479 = vunpack.c.l.b16 %v384
        %v480 = vunpack.c.h.b16 %v384
        %v481 = vunpack.c.l.b16 %v385
        %v482 = vunpack.c.h.b16 %v385
        %v483 = vunpack.c.l.b16 %v386
        %v484 = vunpack.c.h.b16 %v386
        %v485 = vunpack.c.l.b16 %v387
        %v486 = vunpack.c.h.b16 %v387
        %v487 = vunpack.c.l.b16 %v388
        %v488 = vunpack.c.h.b16 %v388
        %v489 = vunpack.c.l.b16 %v389
        %v490 = vunpack.c.h.b16 %v389
        %v491 = vunpack.c.l.b16 %v390
        %v492 = vunpack.c.h.b16 %v390
        %v493 = vunpack.c.l.b16 %v391
        %v494 = vunpack.c.h.b16 %v391
        %v495 = vunpack.c.l.b16 %v392
        %v496 = vunpack.c.h.b16 %v392
        %v497 = vunpack.c.l.b16 %v393
        %v498 = vunpack.c.h.b16 %v393
        %v499 = vunpack.c.l.b16 %v394
        %v500 = vunpack.c.h.b16 %v394
        %v501 = vunpack.c.l.b16 %v395
        %v502 = vunpack.c.h.b16 %v395
        %v503 = vunpack.c.l.b16 %v396
        %v504 = vunpack.c.h.b16 %v396
        %v505 = vunpack.c.l.b16 %v397
        %v506 = vunpack.c.h.b16 %v397
        %v507 = vunpack.c.l.b16 %v398
        %v508 = vunpack.c.h.b16 %v398
        %v509 = vunpack.c.l.b16 %v399
        %v510 = vunpack.c.h.b16 %v399
        %v511 = vunpack.c.l.b16 %v400
        %v512 = vunpack.c.h.b16 %v400
        %v513 = vunpack.c.l.b16 %v401
        %v514 = vunpack.c.h.b16 %v401
        %v515 = vunpack.c.l.b16 %v402
        %v516 = vunpack.c.h.b16 %v402
        %v517 = vunpack.c.l.b16 %v403
        %v518 = vunpack.c.h.b16 %v403
        %v519 = vunpack.c.l.b16 %v404
        %v520 = vunpack.c.h.b16 %v404
        %v521 = vunpack.c.l.b16 %v405
        %v522 = vunpack.c.h.b16 %v405
        %v523 = vunpack.c.l.b16 %v406
        %v524 = vunpack.c.h.b16 %v406
        %v525 = vunpack.c.l.b16 %v407
        %v526 = vunpack.c.h.b16 %v407
        %v527 = vpack.c.b16 %v457, %v455
        %v528 = vpack.c.b16 %v458, %v456
        %v529 = vpack.c.b16 %v461, %v459
        %v530 = vpack.c.b16 %v462, %v460
        %v531 = vpack.c.b16 %v465, %v463
        %v532 = vpack.c.b16 %v466, %v464
        %v533 = vpack.c.b16 %v469, %v467
        %v534 = vpack.c.b16 %v470, %v468
        %v535 = vpack.c.b16 %v473, %v471
        %v536 = vpack.c.b16 %v474, %v472
        %v537 = vpack.c.b16 %v477, %v475
        %v538 = vpack.c.b16 %v478, %v476
        %v539 = vpack.c.b16 %v481, %v479
        %v540 = vpack.c.b16 %v482, %v480
        %v541 = vpack.c.b16 %v485, %v483
        %v542 = vpack.c.b16 %v486, %v484
        %v543 = vpack.c.b16 %v489, %v487
        %v544 = vpack.c.b16 %v490, %v488
        %v545 = vpack.c.b16 %v493, %v491
        %v546 = vpack.c.b16 %v494, %v492
        %v547 = vpack.c.b16 %v497, %v495
        %v548 = vpack.c.b16 %v498, %v496
        %v549 = vpack.c.b16 %v501, %v499
        %v550 = vpack.c.b16 %v502, %v500
        %v551 = vpack.c.b16 %v505, %v503
        %v552 = vpack.c.b16 %v506, %v504
        %v553 = vpack.c.b16 %v509, %v507
        %v554 = vpack.c.b16 %v510, %v508
        %v555 = vpack.c.b16 %v513, %v511
        %v556 = vpack.c.b16 %v514, %v512
        %v557 = vpack.c.b16 %v517, %v515
        %v558 = vpack.c.b16 %v518, %v516
        %v559 = vpack.c.b16 %v521, %v519
        %v560 = vpack.c.b16 %v522, %v520
        %v561 = vpack.c.b16 %v525, %v523
        %v562 = vpack.c.b16 %v526, %v524
        %vm599 = vcmask 261120
        %v601 = vsel %vm599, %v416, 0
        %603 = vmatprep.subr.bf16.mxu0 %v528
        %604 = vmatpush1.bf16.msra.mxu0 %v527
        %605 = vmatprep.subr.bf16.mxu0 %v530
        %606 = vmatpush1.bf16.msra.mxu0 %v529
        %607 = vmatprep.subr.bf16.mxu0 %v532
        %608 = vmatpush1.bf16.msra.mxu0 %v531
        %609 = vmatprep.subr.bf16.mxu0 %v534
        %610 = vmatpush1.bf16.msra.mxu0 %v533
        %611 = vmatprep.subr.bf16.mxu0 %v536
        %612 = vmatpush1.bf16.msra.mxu0 %v535
        %613 = vmatprep.subr.bf16.mxu0 %v538
        %614 = vmatpush1.bf16.msra.mxu0 %v537
        %615 = vmatprep.subr.bf16.mxu0 %v540
        %616 = vmatpush1.bf16.msra.mxu0 %v539
        %617 = vmatprep.subr.bf16.mxu0 %v542
        %618 = vmatpush1.bf16.msra.mxu0 %v541
        %619 = vmatprep.subr.bf16.mxu0 %v544
        %620 = vmatpush1.bf16.msra.mxu0 %v543
        %621 = vmatprep.subr.bf16.mxu0 %v546
        %622 = vmatpush1.bf16.msra.mxu0 %v545
        %623 = vmatprep.subr.bf16.mxu0 %v548
        %624 = vmatpush1.bf16.msra.mxu0 %v547
        %625 = vmatprep.subr.bf16.mxu0 %v550
        %626 = vmatpush1.bf16.msra.mxu0 %v549
        %627 = vmatprep.subr.bf16.mxu0 %v552
        %628 = vmatpush1.bf16.msra.mxu0 %v551
        %629 = vmatprep.subr.bf16.mxu0 %v554
        %630 = vmatpush1.bf16.msra.mxu0 %v553
        %631 = vmatprep.subr.bf16.mxu0 %v556
        %632 = vmatpush1.bf16.msra.mxu0 %v555
        %633 = vmatprep.subr.bf16.mxu0 %v558
        %634 = vmatpush1.bf16.msra.mxu0 %v557
        %635 = vmatprep.mubr.bf16.mxu0 %v415
        %636 = vmatmul.mubr.bf16.gmra.mrb[0].mxu0 %v414
        %v637 = vpop.f32.mrb[0].mxu0
        %v638 = vadd.f32 0.0, %v637
        %v639 = vpop.f32.mrb[0].mxu0
        %v640 = vadd.f32 0.0, %v639
        %v641 = vpop.f32.mrb[0].mxu0
        %v642 = vadd.f32 0.0, %v641
        %v643 = vpop.f32.mrb[0].mxu0
        %v644 = vadd.f32 0.0, %v643
        %645 = vdwg.mxu0
        %646 = vmatprep.subr.bf16.mxu0 %v560
        %647 = vmatpush1.bf16.msra.mxu0 %v559
        %648 = vmatprep.subr.bf16.mxu0 %v562
        %649 = vmatpush1.bf16.msra.mxu0 %v561
        %650 = vmatprep.subr.bf16.mxu0 0
        %651 = vmatpush1.bf16.msra.mxu0 0
        %652 = vmatprep.subr.bf16.mxu0 0
        %653 = vmatpush1.bf16.msra.mxu0 0
        %654 = vmatprep.subr.bf16.mxu0 0
        %655 = vmatpush1.bf16.msra.mxu0 0
        %656 = vmatprep.subr.bf16.mxu0 0
        %657 = vmatpush1.bf16.msra.mxu0 0
        %658 = vmatprep.subr.bf16.mxu0 0
        %659 = vmatpush1.bf16.msra.mxu0 0
        %660 = vmatprep.subr.bf16.mxu0 0
        %661 = vmatpush1.bf16.msra.mxu0 0
        %662 = vmatprep.subr.bf16.mxu0 0
        %663 = vmatpush1.bf16.msra.mxu0 0
        %664 = vmatprep.subr.bf16.mxu0 0
        %665 = vmatpush1.bf16.msra.mxu0 0
        %666 = vmatprep.subr.bf16.mxu0 0
        %667 = vmatpush1.bf16.msra.mxu0 0
        %668 = vmatprep.subr.bf16.mxu0 0
        %669 = vmatpush1.bf16.msra.mxu0 0
        %670 = vmatprep.subr.bf16.mxu0 0
        %671 = vmatpush1.bf16.msra.mxu0 0
        %672 = vmatprep.subr.bf16.mxu0 0
        %673 = vmatpush1.bf16.msra.mxu0 0
        %674 = vmatprep.subr.bf16.mxu0 0
        %675 = vmatpush1.bf16.msra.mxu0 0
        %676 = vmatprep.subr.bf16.mxu0 0
        %677 = vmatpush1.bf16.msra.mxu0 0
        %678 = vmatprep.mubr.bf16.mxu0 0
        %679 = vmatmul.mubr.bf16.gmra.mrb[0].mxu0 %v601
        %v680 = vpop.f32.mrb[0].mxu0
        %v681 = vadd.f32 %v638, %v680
        %v682 = vpop.f32.mrb[0].mxu0
        %v683 = vadd.f32 %v640, %v682
        %v684 = vpop.f32.mrb[0].mxu0
        %v685 = vadd.f32 %v642, %v684
        %v686 = vpop.f32.mrb[0].mxu0
        %v687 = vadd.f32 %v644, %v686
        %688 = vdwg.mxu0
        %v693 = vunpack.c.l.b16 %v268
        %v694 = vunpack.c.h.b16 %v268
        %v695 = vunpack.c.l.b16 %v269
        %v696 = vunpack.c.l.b16 %v270
        %v697 = vunpack.c.h.b16 %v270
        %v698 = vunpack.c.l.b16 %v271
        %v699 = vpack.c.b16 %v696, %v693
        %v700 = vpack.c.b16 %v697, %v694
        %v701 = vpack.c.b16 %v698, %v695
        %v740 = vunpack.c.l.b16 %v272
        %v741 = vunpack.c.h.b16 %v272
        %v742 = vunpack.c.l.b16 %v273
        %v743 = vunpack.c.h.b16 %v273
        %v744 = vunpack.c.l.b16 %v274
        %v745 = vunpack.c.h.b16 %v274
        %v746 = vunpack.c.l.b16 %v275
        %v747 = vunpack.c.h.b16 %v275
        %v748 = vunpack.c.l.b16 %v276
        %v749 = vunpack.c.h.b16 %v276
        %v750 = vunpack.c.l.b16 %v277
        %v751 = vunpack.c.h.b16 %v277
        %v752 = vunpack.c.l.b16 %v278
        %v753 = vunpack.c.h.b16 %v278
        %v754 = vunpack.c.l.b16 %v279
        %v755 = vunpack.c.h.b16 %v279
        %v756 = vunpack.c.l.b16 %v280
        %v757 = vunpack.c.h.b16 %v280
        %v758 = vunpack.c.l.b16 %v281
        %v759 = vunpack.c.h.b16 %v281
        %v760 = vunpack.c.l.b16 %v282
        %v761 = vunpack.c.h.b16 %v282
        %v762 = vunpack.c.l.b16 %v283
        %v763 = vunpack.c.h.b16 %v283
        %v764 = vunpack.c.l.b16 %v284
        %v765 = vunpack.c.h.b16 %v284
        %v766 = vunpack.c.l.b16 %v285
        %v767 = vunpack.c.h.b16 %v285
        %v768 = vunpack.c.l.b16 %v286
        %v769 = vunpack.c.h.b16 %v286
        %v770 = vunpack.c.l.b16 %v287
        %v771 = vunpack.c.h.b16 %v287
        %v772 = vunpack.c.l.b16 %v288
        %v773 = vunpack.c.h.b16 %v288
        %v774 = vunpack.c.l.b16 %v289
        %v775 = vunpack.c.h.b16 %v289
        %v776 = vunpack.c.l.b16 %v290
        %v777 = vunpack.c.h.b16 %v290
        %v778 = vunpack.c.l.b16 %v291
        %v779 = vunpack.c.h.b16 %v291
        %v780 = vunpack.c.l.b16 %v292
        %v781 = vunpack.c.h.b16 %v292
        %v782 = vunpack.c.l.b16 %v293
        %v783 = vunpack.c.h.b16 %v293
        %v784 = vunpack.c.l.b16 %v294
        %v785 = vunpack.c.h.b16 %v294
        %v786 = vunpack.c.l.b16 %v295
        %v787 = vunpack.c.h.b16 %v295
        %v788 = vunpack.c.l.b16 %v296
        %v789 = vunpack.c.h.b16 %v296
        %v790 = vunpack.c.l.b16 %v297
        %v791 = vunpack.c.h.b16 %v297
        %v792 = vunpack.c.l.b16 %v298
        %v793 = vunpack.c.h.b16 %v298
        %v794 = vunpack.c.l.b16 %v299
        %v795 = vunpack.c.h.b16 %v299
        %v796 = vunpack.c.l.b16 %v300
        %v797 = vunpack.c.h.b16 %v300
        %v798 = vunpack.c.l.b16 %v301
        %v799 = vunpack.c.h.b16 %v301
        %v800 = vunpack.c.l.b16 %v302
        %v801 = vunpack.c.h.b16 %v302
        %v802 = vunpack.c.l.b16 %v303
        %v803 = vunpack.c.h.b16 %v303
        %v804 = vunpack.c.l.b16 %v304
        %v805 = vunpack.c.h.b16 %v304
        %v806 = vunpack.c.l.b16 %v305
        %v807 = vunpack.c.h.b16 %v305
        %v808 = vunpack.c.l.b16 %v306
        %v809 = vunpack.c.h.b16 %v306
        %v810 = vunpack.c.l.b16 %v307
        %v811 = vunpack.c.h.b16 %v307
        %v812 = vpack.c.b16 %v742, %v740
        %v813 = vpack.c.b16 %v743, %v741
        %v814 = vpack.c.b16 %v746, %v744
        %v815 = vpack.c.b16 %v747, %v745
        %v816 = vpack.c.b16 %v750, %v748
        %v817 = vpack.c.b16 %v751, %v749
        %v818 = vpack.c.b16 %v754, %v752
        %v819 = vpack.c.b16 %v755, %v753
        %v820 = vpack.c.b16 %v758, %v756
        %v821 = vpack.c.b16 %v759, %v757
        %v822 = vpack.c.b16 %v762, %v760
        %v823 = vpack.c.b16 %v763, %v761
        %v824 = vpack.c.b16 %v766, %v764
        %v825 = vpack.c.b16 %v767, %v765
        %v826 = vpack.c.b16 %v770, %v768
        %v827 = vpack.c.b16 %v771, %v769
        %v828 = vpack.c.b16 %v774, %v772
        %v829 = vpack.c.b16 %v775, %v773
        %v830 = vpack.c.b16 %v778, %v776
        %v831 = vpack.c.b16 %v779, %v777
        %v832 = vpack.c.b16 %v782, %v780
        %v833 = vpack.c.b16 %v783, %v781
        %v834 = vpack.c.b16 %v786, %v784
        %v835 = vpack.c.b16 %v787, %v785
        %v836 = vpack.c.b16 %v790, %v788
        %v837 = vpack.c.b16 %v791, %v789
        %v838 = vpack.c.b16 %v794, %v792
        %v839 = vpack.c.b16 %v795, %v793
        %v840 = vpack.c.b16 %v798, %v796
        %v841 = vpack.c.b16 %v799, %v797
        %v842 = vpack.c.b16 %v802, %v800
        %v843 = vpack.c.b16 %v803, %v801
        %v844 = vpack.c.b16 %v806, %v804
        %v845 = vpack.c.b16 %v807, %v805
        %v846 = vpack.c.b16 %v810, %v808
        %v847 = vpack.c.b16 %v811, %v809
        %v885 = vsel %vm599, %v701, 0
        %887 = vmatprep.subr.bf16.mxu0 %v813
        %888 = vmatpush1.bf16.msra.mxu0 %v812
        %889 = vmatprep.subr.bf16.mxu0 %v815
        %890 = vmatpush1.bf16.msra.mxu0 %v814
        %891 = vmatprep.subr.bf16.mxu0 %v817
        %892 = vmatpush1.bf16.msra.mxu0 %v816
        %893 = vmatprep.subr.bf16.mxu0 %v819
        %894 = vmatpush1.bf16.msra.mxu0 %v818
        %895 = vmatprep.subr.bf16.mxu0 %v821
        %896 = vmatpush1.bf16.msra.mxu0 %v820
        %897 = vmatprep.subr.bf16.mxu0 %v823
        %898 = vmatpush1.bf16.msra.mxu0 %v822
        %899 = vmatprep.subr.bf16.mxu0 %v825
        %900 = vmatpush1.bf16.msra.mxu0 %v824
        %901 = vmatprep.subr.bf16.mxu0 %v827
        %902 = vmatpush1.bf16.msra.mxu0 %v826
        %903 = vmatprep.subr.bf16.mxu0 %v829
        %904 = vmatpush1.bf16.msra.mxu0 %v828
        %905 = vmatprep.subr.bf16.mxu0 %v831
        %906 = vmatpush1.bf16.msra.mxu0 %v830
        %907 = vmatprep.subr.bf16.mxu0 %v833
        %908 = vmatpush1.bf16.msra.mxu0 %v832
        %909 = vmatprep.subr.bf16.mxu0 %v835
        %910 = vmatpush1.bf16.msra.mxu0 %v834
        %911 = vmatprep.subr.bf16.mxu0 %v837
        %912 = vmatpush1.bf16.msra.mxu0 %v836
        %913 = vmatprep.subr.bf16.mxu0 %v839
        %914 = vmatpush1.bf16.msra.mxu0 %v838
        %915 = vmatprep.subr.bf16.mxu0 %v841
        %916 = vmatpush1.bf16.msra.mxu0 %v840
        %917 = vmatprep.subr.bf16.mxu0 %v843
        %918 = vmatpush1.bf16.msra.mxu0 %v842
        %919 = vmatprep.mubr.bf16.mxu0 %v700
        %920 = vmatmul.mubr.bf16.gmra.mrb[0].mxu0 %v699
        %v921 = vpop.f32.mrb[0].mxu0
        %v922 = vadd.f32 %v681, %v921
        %v923 = vpop.f32.mrb[0].mxu0
        %v924 = vadd.f32 %v683, %v923
        %v925 = vpop.f32.mrb[0].mxu0
        %v926 = vadd.f32 %v685, %v925
        %v927 = vpop.f32.mrb[0].mxu0
        %v928 = vadd.f32 %v687, %v927
        %929 = vdwg.mxu0
        %930 = vmatprep.subr.bf16.mxu0 %v845
        %931 = vmatpush1.bf16.msra.mxu0 %v844
        %932 = vmatprep.subr.bf16.mxu0 %v847
        %933 = vmatpush1.bf16.msra.mxu0 %v846
        %934 = vmatprep.subr.bf16.mxu0 0
        %935 = vmatpush1.bf16.msra.mxu0 0
        %936 = vmatprep.subr.bf16.mxu0 0
        %937 = vmatpush1.bf16.msra.mxu0 0
        %938 = vmatprep.subr.bf16.mxu0 0
        %939 = vmatpush1.bf16.msra.mxu0 0
        %940 = vmatprep.subr.bf16.mxu0 0
        %941 = vmatpush1.bf16.msra.mxu0 0
        %942 = vmatprep.subr.bf16.mxu0 0
        %943 = vmatpush1.bf16.msra.mxu0 0
        %944 = vmatprep.subr.bf16.mxu0 0
        %945 = vmatpush1.bf16.msra.mxu0 0
        %946 = vmatprep.subr.bf16.mxu0 0
        %947 = vmatpush1.bf16.msra.mxu0 0
        %948 = vmatprep.subr.bf16.mxu0 0
        %949 = vmatpush1.bf16.msra.mxu0 0
        %950 = vmatprep.subr.bf16.mxu0 0
        %951 = vmatpush1.bf16.msra.mxu0 0
        %952 = vmatprep.subr.bf16.mxu0 0
        %953 = vmatpush1.bf16.msra.mxu0 0
        %954 = vmatprep.subr.bf16.mxu0 0
        %955 = vmatpush1.bf16.msra.mxu0 0
        %956 = vmatprep.subr.bf16.mxu0 0
        %957 = vmatpush1.bf16.msra.mxu0 0
        %958 = vmatprep.subr.bf16.mxu0 0
        %959 = vmatpush1.bf16.msra.mxu0 0
        %960 = vmatprep.subr.bf16.mxu0 0
        %961 = vmatpush1.bf16.msra.mxu0 0
        %962 = vmatprep.mubr.bf16.mxu0 0
        %963 = vmatmul.mubr.bf16.gmra.mrb[0].mxu0 %v885
        %v964 = vpop.f32.mrb[0].mxu0
        %v965 = vadd.f32 %v922, %v964
        %v966 = vpop.f32.mrb[0].mxu0
        %v967 = vadd.f32 %v924, %v966
        %v968 = vpop.f32.mrb[0].mxu0
        %v969 = vadd.f32 %v926, %v968
        %v970 = vpop.f32.mrb[0].mxu0
        %v971 = vadd.f32 %v928, %v970
        %972 = vdwg.mxu0
        %v973 = vld [vmem:[#allocation2] sm:$0xee]
        %v974 = vld [vmem:[#allocation2 + $0x8] sm:$0xe]
        %v975 = vld [vmem:[#allocation2 + $0x18] sm:$0xee]
        %v976 = vld [vmem:[#allocation2 + $0x20] sm:$0xe]
        %vm985 = vcmask 1042432
        %vm986 = vcmask 1046532
        %vm987 = vmor %vm985, %vm986
        %v988 = vrot.slane %v973, 5
        %v989 = vrot.slane %v988, 4
        %v990 = vrot.slane %v308, 5
        %v991 = vsel %vm987, %v989, %v990
        %v992 = vrot.slane %v974, 5
        %v993 = vrot.slane %v992, 4
        %v994 = vrot.slane %v309, 5
        %v995 = vsel %vm987, %v993, %v994
        %v996 = vrot.slane %v975, 5
        %v997 = vrot.slane %v996, 4
        %v998 = vrot.slane %v310, 5
        %v999 = vsel %vm987, %v997, %v998
        %v1000 = vrot.slane %v976, 5
        %v1001 = vrot.slane %v1000, 4
        %v1002 = vrot.slane %v311, 5
        %v1003 = vsel %vm987, %v1001, %v1002
        %s1004 = scalar_lea.vmem [#allocation8], 576
        %v1005 = vld [vmem:[%s1004] sm:$0xff]
        %v1006 = vld [vmem:[%s1004 + $0x8] sm:$0xff]
        %v1007 = vld [vmem:[%s1004 + $0x10] sm:$0xff]
        %v1008 = vld [vmem:[%s1004 + $0x18] sm:$0xff]
        %v1009 = vld [vmem:[%s1004 + $0x20] sm:$0xff]
        %v1010 = vld [vmem:[%s1004 + $0x28] sm:$0xff]
        %v1011 = vld [vmem:[%s1004 + $0x30] sm:$0xff]
        %v1012 = vld [vmem:[%s1004 + $0x38] sm:$0xff]
        %v1013 = vld [vmem:[%s1004 + $0x40] sm:$0xff]
        %v1014 = vld [vmem:[%s1004 + $0x48] sm:$0xff]
        %v1015 = vld [vmem:[%s1004 + $0x50] sm:$0xff]
        %v1016 = vld [vmem:[%s1004 + $0x58] sm:$0xff]
        %v1017 = vld [vmem:[%s1004 + $0x60] sm:$0xff]
        %v1018 = vld [vmem:[%s1004 + $0x68] sm:$0xff]
        %v1019 = vld [vmem:[%s1004 + $0x70] sm:$0xff]
        %v1020 = vld [vmem:[%s1004 + $0x78] sm:$0xff]
        %v1021 = vld [vmem:[%s1004 + $0x80] sm:$0xff]
        %v1022 = vld [vmem:[%s1004 + $0x88] sm:$0xff]
        %v1023 = vld [vmem:[%s1004 + $0x90] sm:$0xff]
        %v1024 = vld [vmem:[%s1004 + $0x98] sm:$0xff]
        %v1025 = vld [vmem:[%s1004 + $0xa0] sm:$0xff]
        %v1026 = vld [vmem:[%s1004 + $0xa8] sm:$0xff]
        %v1027 = vld [vmem:[%s1004 + $0xb0] sm:$0xff]
        %v1028 = vld [vmem:[%s1004 + $0xb8] sm:$0xff]
        %v1029 = vld [vmem:[%s1004 + $0xc0] sm:$0xff]
        %v1030 = vld [vmem:[%s1004 + $0xc8] sm:$0xff]
        %v1031 = vld [vmem:[%s1004 + $0xd0] sm:$0xff]
        %v1032 = vld [vmem:[%s1004 + $0xd8] sm:$0xff]
        %v1033 = vld [vmem:[%s1004 + $0xe0] sm:$0xff]
        %v1034 = vld [vmem:[%s1004 + $0xe8] sm:$0xff]
        %v1035 = vld [vmem:[%s1004 + $0xf0] sm:$0xff]
        %v1036 = vld [vmem:[%s1004 + $0xf8] sm:$0xff]
        %v1037 = vld [vmem:[%s1004 + $0x100] sm:$0xff]
        %v1038 = vld [vmem:[%s1004 + $0x108] sm:$0xff]
        %v1039 = vld [vmem:[%s1004 + $0x110] sm:$0xff]
        %v1040 = vld [vmem:[%s1004 + $0x118] sm:$0xff]
        %v1041 = vunpack.c.l.b16 %v991
        %v1042 = vunpack.c.h.b16 %v991
        %v1043 = vunpack.c.l.b16 %v995
        %v1044 = vunpack.c.l.b16 %v999
        %v1045 = vunpack.c.h.b16 %v999
        %v1046 = vunpack.c.l.b16 %v1003
        %v1047 = vpack.c.b16 %v1044, %v1041
        %v1048 = vpack.c.b16 %v1045, %v1042
        %v1049 = vpack.c.b16 %v1046, %v1043
        %v1088 = vunpack.c.l.b16 %v1005
        %v1089 = vunpack.c.h.b16 %v1005
        %v1090 = vunpack.c.l.b16 %v1006
        %v1091 = vunpack.c.h.b16 %v1006
        %v1092 = vunpack.c.l.b16 %v1007
        %v1093 = vunpack.c.h.b16 %v1007
        %v1094 = vunpack.c.l.b16 %v1008
        %v1095 = vunpack.c.h.b16 %v1008
        %v1096 = vunpack.c.l.b16 %v1009
        %v1097 = vunpack.c.h.b16 %v1009
        %v1098 = vunpack.c.l.b16 %v1010
        %v1099 = vunpack.c.h.b16 %v1010
        %v1100 = vunpack.c.l.b16 %v1011
        %v1101 = vunpack.c.h.b16 %v1011
        %v1102 = vunpack.c.l.b16 %v1012
        %v1103 = vunpack.c.h.b16 %v1012
        %v1104 = vunpack.c.l.b16 %v1013
        %v1105 = vunpack.c.h.b16 %v1013
        %v1106 = vunpack.c.l.b16 %v1014
        %v1107 = vunpack.c.h.b16 %v1014
        %v1108 = vunpack.c.l.b16 %v1015
        %v1109 = vunpack.c.h.b16 %v1015
        %v1110 = vunpack.c.l.b16 %v1016
        %v1111 = vunpack.c.h.b16 %v1016
        %v1112 = vunpack.c.l.b16 %v1017
        %v1113 = vunpack.c.h.b16 %v1017
        %v1114 = vunpack.c.l.b16 %v1018
        %v1115 = vunpack.c.h.b16 %v1018
        %v1116 = vunpack.c.l.b16 %v1019
        %v1117 = vunpack.c.h.b16 %v1019
        %v1118 = vunpack.c.l.b16 %v1020
        %v1119 = vunpack.c.h.b16 %v1020
        %v1120 = vunpack.c.l.b16 %v1021
        %v1121 = vunpack.c.h.b16 %v1021
        %v1122 = vunpack.c.l.b16 %v1022
        %v1123 = vunpack.c.h.b16 %v1022
        %v1124 = vunpack.c.l.b16 %v1023
        %v1125 = vunpack.c.h.b16 %v1023
        %v1126 = vunpack.c.l.b16 %v1024
        %v1127 = vunpack.c.h.b16 %v1024
        %v1128 = vunpack.c.l.b16 %v1025
        %v1129 = vunpack.c.h.b16 %v1025
        %v1130 = vunpack.c.l.b16 %v1026
        %v1131 = vunpack.c.h.b16 %v1026
        %v1132 = vunpack.c.l.b16 %v1027
        %v1133 = vunpack.c.h.b16 %v1027
        %v1134 = vunpack.c.l.b16 %v1028
        %v1135 = vunpack.c.h.b16 %v1028
        %v1136 = vunpack.c.l.b16 %v1029
        %v1137 = vunpack.c.h.b16 %v1029
        %v1138 = vunpack.c.l.b16 %v1030
        %v1139 = vunpack.c.h.b16 %v1030
        %v1140 = vunpack.c.l.b16 %v1031
        %v1141 = vunpack.c.h.b16 %v1031
        %v1142 = vunpack.c.l.b16 %v1032
        %v1143 = vunpack.c.h.b16 %v1032
        %v1144 = vunpack.c.l.b16 %v1033
        %v1145 = vunpack.c.h.b16 %v1033
        %v1146 = vunpack.c.l.b16 %v1034
        %v1147 = vunpack.c.h.b16 %v1034
        %v1148 = vunpack.c.l.b16 %v1035
        %v1149 = vunpack.c.h.b16 %v1035
        %v1150 = vunpack.c.l.b16 %v1036
        %v1151 = vunpack.c.h.b16 %v1036
        %v1152 = vunpack.c.l.b16 %v1037
        %v1153 = vunpack.c.h.b16 %v1037
        %v1154 = vunpack.c.l.b16 %v1038
        %v1155 = vunpack.c.h.b16 %v1038
        %v1156 = vunpack.c.l.b16 %v1039
        %v1157 = vunpack.c.h.b16 %v1039
        %v1158 = vunpack.c.l.b16 %v1040
        %v1159 = vunpack.c.h.b16 %v1040
        %v1160 = vpack.c.b16 %v1090, %v1088
        %v1161 = vpack.c.b16 %v1091, %v1089
        %v1162 = vpack.c.b16 %v1094, %v1092
        %v1163 = vpack.c.b16 %v1095, %v1093
        %v1164 = vpack.c.b16 %v1098, %v1096
        %v1165 = vpack.c.b16 %v1099, %v1097
        %v1166 = vpack.c.b16 %v1102, %v1100
        %v1167 = vpack.c.b16 %v1103, %v1101
        %v1168 = vpack.c.b16 %v1106, %v1104
        %v1169 = vpack.c.b16 %v1107, %v1105
        %v1170 = vpack.c.b16 %v1110, %v1108
        %v1171 = vpack.c.b16 %v1111, %v1109
        %v1172 = vpack.c.b16 %v1114, %v1112
        %v1173 = vpack.c.b16 %v1115, %v1113
        %v1174 = vpack.c.b16 %v1118, %v1116
        %v1175 = vpack.c.b16 %v1119, %v1117
        %v1176 = vpack.c.b16 %v1122, %v1120
        %v1177 = vpack.c.b16 %v1123, %v1121
        %v1178 = vpack.c.b16 %v1126, %v1124
        %v1179 = vpack.c.b16 %v1127, %v1125
        %v1180 = vpack.c.b16 %v1130, %v1128
        %v1181 = vpack.c.b16 %v1131, %v1129
        %v1182 = vpack.c.b16 %v1134, %v1132
        %v1183 = vpack.c.b16 %v1135, %v1133
        %v1184 = vpack.c.b16 %v1138, %v1136
        %v1185 = vpack.c.b16 %v1139, %v1137
        %v1186 = vpack.c.b16 %v1142, %v1140
        %v1187 = vpack.c.b16 %v1143, %v1141
        %v1188 = vpack.c.b16 %v1146, %v1144
        %v1189 = vpack.c.b16 %v1147, %v1145
        %v1190 = vpack.c.b16 %v1150, %v1148
        %v1191 = vpack.c.b16 %v1151, %v1149
        %v1192 = vpack.c.b16 %v1154, %v1152
        %v1193 = vpack.c.b16 %v1155, %v1153
        %v1194 = vpack.c.b16 %v1158, %v1156
        %v1195 = vpack.c.b16 %v1159, %v1157
        %v1233 = vsel %vm599, %v1049, 0
        %1235 = vmatprep.subr.bf16.mxu0 %v1161
        %1236 = vmatpush1.bf16.msra.mxu0 %v1160
        %1237 = vmatprep.subr.bf16.mxu0 %v1163
        %1238 = vmatpush1.bf16.msra.mxu0 %v1162
        %1239 = vmatprep.subr.bf16.mxu0 %v1165
        %1240 = vmatpush1.bf16.msra.mxu0 %v1164
        %1241 = vmatprep.subr.bf16.mxu0 %v1167
        %1242 = vmatpush1.bf16.msra.mxu0 %v1166
        %1243 = vmatprep.subr.bf16.mxu0 %v1169
        %1244 = vmatpush1.bf16.msra.mxu0 %v1168
        %1245 = vmatprep.subr.bf16.mxu0 %v1171
        %1246 = vmatpush1.bf16.msra.mxu0 %v1170
        %1247 = vmatprep.subr.bf16.mxu0 %v1173
        %1248 = vmatpush1.bf16.msra.mxu0 %v1172
        %1249 = vmatprep.subr.bf16.mxu0 %v1175
        %1250 = vmatpush1.bf16.msra.mxu0 %v1174
        %1251 = vmatprep.subr.bf16.mxu0 %v1177
        %1252 = vmatpush1.bf16.msra.mxu0 %v1176
        %1253 = vmatprep.subr.bf16.mxu0 %v1179
        %1254 = vmatpush1.bf16.msra.mxu0 %v1178
        %1255 = vmatprep.subr.bf16.mxu0 %v1181
        %1256 = vmatpush1.bf16.msra.mxu0 %v1180
        %1257 = vmatprep.subr.bf16.mxu0 %v1183
        %1258 = vmatpush1.bf16.msra.mxu0 %v1182
        %1259 = vmatprep.subr.bf16.mxu0 %v1185
        %1260 = vmatpush1.bf16.msra.mxu0 %v1184
        %1261 = vmatprep.subr.bf16.mxu0 %v1187
        %1262 = vmatpush1.bf16.msra.mxu0 %v1186
        %1263 = vmatprep.subr.bf16.mxu0 %v1189
        %1264 = vmatpush1.bf16.msra.mxu0 %v1188
        %1265 = vmatprep.subr.bf16.mxu0 %v1191
        %1266 = vmatpush1.bf16.msra.mxu0 %v1190
        %1267 = vmatprep.mubr.bf16.mxu0 %v1048
        %1268 = vmatmul.mubr.bf16.gmra.mrb[0].mxu0 %v1047
        %v1269 = vpop.f32.mrb[0].mxu0
        %v1270 = vadd.f32 0.0, %v1269
        %v1271 = vpop.f32.mrb[0].mxu0
        %v1272 = vadd.f32 0.0, %v1271
        %v1273 = vpop.f32.mrb[0].mxu0
        %v1274 = vadd.f32 0.0, %v1273
        %v1275 = vpop.f32.mrb[0].mxu0
        %v1276 = vadd.f32 0.0, %v1275
        %1277 = vdwg.mxu0
        %1278 = vmatprep.subr.bf16.mxu0 %v1193
        %1279 = vmatpush1.bf16.msra.mxu0 %v1192
        %1280 = vmatprep.subr.bf16.mxu0 %v1195
        %1281 = vmatpush1.bf16.msra.mxu0 %v1194
        %1282 = vmatprep.subr.bf16.mxu0 0
        %1283 = vmatpush1.bf16.msra.mxu0 0
        %1284 = vmatprep.subr.bf16.mxu0 0
        %1285 = vmatpush1.bf16.msra.mxu0 0
        %1286 = vmatprep.subr.bf16.mxu0 0
        %1287 = vmatpush1.bf16.msra.mxu0 0
        %1288 = vmatprep.subr.bf16.mxu0 0
        %1289 = vmatpush1.bf16.msra.mxu0 0
        %1290 = vmatprep.subr.bf16.mxu0 0
        %1291 = vmatpush1.bf16.msra.mxu0 0
        %1292 = vmatprep.subr.bf16.mxu0 0
        %1293 = vmatpush1.bf16.msra.mxu0 0
        %1294 = vmatprep.subr.bf16.mxu0 0
        %1295 = vmatpush1.bf16.msra.mxu0 0
        %1296 = vmatprep.subr.bf16.mxu0 0
        %1297 = vmatpush1.bf16.msra.mxu0 0
        %1298 = vmatprep.subr.bf16.mxu0 0
        %1299 = vmatpush1.bf16.msra.mxu0 0
        %1300 = vmatprep.subr.bf16.mxu0 0
        %1301 = vmatpush1.bf16.msra.mxu0 0
        %1302 = vmatprep.subr.bf16.mxu0 0
        %1303 = vmatpush1.bf16.msra.mxu0 0
        %1304 = vmatprep.subr.bf16.mxu0 0
        %1305 = vmatpush1.bf16.msra.mxu0 0
        %1306 = vmatprep.subr.bf16.mxu0 0
        %1307 = vmatpush1.bf16.msra.mxu0 0
        %1308 = vmatprep.subr.bf16.mxu0 0
        %1309 = vmatpush1.bf16.msra.mxu0 0
        %1310 = vmatprep.mubr.bf16.mxu0 0
        %1311 = vmatmul.mubr.bf16.gmra.mrb[0].mxu0 %v1233
        %v1312 = vpop.f32.mrb[0].mxu0
        %v1313 = vadd.f32 %v1270, %v1312
        %v1314 = vpop.f32.mrb[0].mxu0
        %v1315 = vadd.f32 %v1272, %v1314
        %v1316 = vpop.f32.mrb[0].mxu0
        %v1317 = vadd.f32 %v1274, %v1316
        %v1318 = vpop.f32.mrb[0].mxu0
        %v1319 = vadd.f32 %v1276, %v1318
        %1320 = vdwg.mxu0
        %v1321 = vadd.f32 %v965, %v1313
        %v1322 = vadd.f32 %v967, %v1315
        %v1323 = vadd.f32 %v969, %v1317
        %v1324 = vadd.f32 %v971, %v1319
        %v1325 = vld [vmem:[%s3] sm:$0x3]
        %v1327 = vlaneseq
        %v1328 = vshrl.u32 %v1327, 7
        %v1329 = vsub.s32 0, %v1328
        %v1330 = vrot.slane %v1325, %v1329
        %v1331 = vlaneseq
        %v1332 = vshrl.u32 %v1331, 7
        %v1333 = vsub.s32 1, %v1332
        %v1334 = vrot.slane %v1325, %v1333
        %v1337 = vadd.f32 %v1321, %v1330
        %v1338 = vadd.f32 %v1322, %v1334
        %v1339 = vadd.f32 %v1323, %v1330
        %v1340 = vadd.f32 %v1324, %v1334
        %s1341 = sld [smem:[#allocation4]]
        %vm1342 = vcmp.ge.f32.partialorder %v1337, 0.0
        %vm1343 = vcmp.ge.f32.partialorder %v1338, 0.0
        %vm1344 = vcmp.ge.f32.partialorder %v1339, 0.0
        %vm1345 = vcmp.ge.f32.partialorder %v1340, 0.0
        %v1346 = vstv %s1341
        %v1347 = vmul.f32 %v1346, %v1337
        %v1348 = vmul.f32 %v1346, %v1338
        %v1349 = vmul.f32 %v1346, %v1339
        %v1350 = vmul.f32 %v1346, %v1340
        %v1351 = vsel %vm1342, %v1337, %v1347
        %v1352 = vsel %vm1343, %v1338, %v1348
        %v1353 = vsel %vm1344, %v1339, %v1349
        %v1354 = vsel %vm1345, %v1340, %v1350
        %1355 = vst [vmem:[%s206] sm:$0xff] %v1351
        %1356 = vst [vmem:[%s206 + $0x8] sm:$0xff] %v1352
        %1357 = vst [vmem:[%s206 + $0x10] sm:$0xff] %v1353
        %1358 = vst [vmem:[%s206 + $0x18] sm:$0xff] %v1354
        %s1359 = sand.u32 %s99, 1
        %s1360 = scalar_lea.sflag [#allocation7], %s1359
        %s1361 = sand.u32 %s99, 1
        %s1362 = smul.addr %s1361, 32
        %s1363 = scalar_lea.vmem [#allocation10], %s1362
        // Predicated region
        $region41: #{tpu_custom_call.1} parent=31 // pred_check
          %p1364 = pneg %p109
        $region42: #{tpu_custom_call.1} parent=31 // pred_check_branch
          %1366 = sbr.rel (%p1364) target = $region44
        $region43: #{tpu_custom_call.1} parent=31 // pred_region
          %s1367 = smul.u32 2, %s23
          %s1369 = ssub.s32 512, 512
          %1370 = vsyncadd %s1360, %s1369
          %s1371 = smul.addr %s1367, 2
          %s1372 = smul.addr %s1371, 128
          %s1373 = scalar_lea.hbm %s4, %s1372
          %s1374 = sshll.u32 %s1363, 4
          %s1375 = int_to_ptr.vmem [resolvable:$true] %s1374
          %1380 = dma.vmem_to_hbm [thread:$0]  %s1375, 512, %s1373, %s1360, 256, 256, 16
        $region44: #{tpu_custom_call.1} parent=31 // pred_fallthru
          _
      $region32: #{tpu_custom_call.1} parent=5 // pred_fallthru
        _
      %p1381 = scmp.le.s32.totalorder 2, %s18
      // Predicated region
      $region45: #{tpu_custom_call.1} parent=5 // pred_check
        %p1382 = pneg %p1381
      $region46: #{tpu_custom_call.1} parent=5 // pred_check_branch
        %1384 = sbr.rel (%p1382) target = $region48
      $region47: #{tpu_custom_call.1} parent=5 // pred_region
        %s1385 = ssub.s32 %s18, 2
        // Predicated region
        $region49: #{tpu_custom_call.1} parent=47 // pred_check
          %p1386 = pneg %p115
        $region50: #{tpu_custom_call.1} parent=47 // pred_check_branch
          %1388 = sbr.rel (%p1386) target = $region52
        $region51: #{tpu_custom_call.1} parent=47 // pred_region
          %s1389 = sand.u32 %s100, 1
          %s1390 = scalar_lea.sflag [#allocation7], %s1389
          %s1391 = sand.u32 %s100, 1
          %s1392 = smul.addr %s1391, 32
          %s1393 = scalar_lea.vmem [#allocation10], %s1392
          %1394 = dma.done %s1390, 512
        $region52: #{tpu_custom_call.1} parent=47 // pred_fallthru
          _
      $region48: #{tpu_custom_call.1} parent=5 // pred_fallthru
        _
    $region6: #{tpu_custom_call.1} parent=1 // loop_footer
      %s22 = sadd.s32 1, %s18
    $region7: #{tpu_custom_call.1} parent=1 // loop_footer_branch
      %17 = sbr.rel target = $region3
    $region8: #{tpu_custom_call.1} parent=1 // loop_exit
      _
    %1395 = vsyncpa [#allocation6], 1
    %s1396 = scalar_lea.sflag [#allocation6], 1
    %1397 = vsyncpa %s1396, 1
    %1398 = vsyncpa [#allocation9], 1
    %1399 = vsyncpa [#allocation7], 1
    %s1400 = scalar_lea.sflag [#allocation7], 1
    %1401 = vsyncpa %s1400, 1

</llo_original>
